<compile_context>
chip_gen: v6e
topology: v6e:2x2x1
jax: 0.10.0
libtpu: 0.0.40
codegen_flags: <defaults>
</compile_context>

<pallas_src>
import jax
import jax.numpy as jnp
from jax.experimental import pallas as pl
from jax.experimental.pallas import tpu as pltpu


def _round_up(n: int, m: int) -> int:
    return ((n + m - 1) // m) * m


def _cdiv(a: int, b: int) -> int:
    return -(-a // b)


# ---------------------------------------------------------------------------
# Kernel body: one (batch-tile, hidden-slab) grid step of relu(x@W1+b1)@W2+b2
# ---------------------------------------------------------------------------
def _projection_head_kernel(x_ref, w1_ref, b1_ref, w2_ref, b2_ref, o_ref,
                            acc_ref):
    k = pl.program_id(1)                       # hidden-slab (reduction) index

    @pl.when(k == 0)
    def _init():
        acc_ref[...] = jnp.zeros_like(acc_ref)

    # bf16 operands for the MXU, f32 accumulation.  The cast runs on data that
    # is already in VMEM -> no extra HBM pass in the wrapper.
    xb = x_ref[...].astype(jnp.bfloat16)
    h = jnp.dot(xb, w1_ref[...], preferred_element_type=jnp.float32)
    # bias + ReLU fused in f32, then immediately truncated to bf16 so only a
    # bf16 hidden slab stays live between the two matmuls.
    h = jnp.maximum(h + b1_ref[...], 0.0).astype(jnp.bfloat16)
    acc_ref[...] += jnp.dot(h, w2_ref[...], preferred_element_type=jnp.float32)

    @pl.when(k == pl.num_programs(1) - 1)
    def _finalize():
        o_ref[...] = (acc_ref[...] + b2_ref[...]).astype(o_ref.dtype)


# ---------------------------------------------------------------------------
# One-time parameter packing (hoisted out of the per-call path)
# ---------------------------------------------------------------------------
def _pad_cast(a, shape, dtype):
    """Cast (and zero-pad, only if needed) `a` to `shape`/`dtype`."""
    if a.dtype != dtype:
        a = a.astype(dtype)
    if tuple(a.shape) == tuple(shape):
        return a
    out = jnp.zeros(shape, dtype)
    return out.at[tuple(slice(0, s) for s in a.shape)].set(a)


def prepare_projection_params(w1, b1, w2, b2):
    """Pack ProjectionHead params once: bf16 weights (MXU-native), f32 biases,
    hidden dim zero-padded to a multiple of 128 (lane-dense, streamable in
    128-aligned slabs).  Zero hidden padding is numerically inert:
    relu(0 + 0) = 0 contributes nothing through W2.

    w1: (input_dim, hidden_dim)   -- transposed vs. torch nn.Linear.weight
    b1: (hidden_dim,) or (1, hidden_dim)
    w2: (hidden_dim, output_dim)
    b2: (output_dim,) or (1, output_dim)
    """
    d_in, h = w1.shape
    h2, d_out = w2.shape
    assert h2 == h, "w1/w2 hidden dims disagree"
    h_pad = _round_up(h, 128)
    return (
        _pad_cast(w1, (d_in, h_pad), jnp.bfloat16),
        _pad_cast(jnp.reshape(b1, (1, h)), (1, h_pad), jnp.float32),
        _pad_cast(w2, (h_pad, d_out), jnp.bfloat16),
        _pad_cast(jnp.reshape(b2, (1, d_out)), (1, d_out), jnp.float32),
    )


# ---------------------------------------------------------------------------
# VMEM budgeting and tile selection
# ---------------------------------------------------------------------------
def _usable_vmem_bytes() -> int:
    cap = 64 << 20                     # conservative default: v7x per-TC VMEM
    try:
        cap = int(pltpu.get_tpu_info().vmem_capacity_bytes)
    except Exception:                  # hardware query unavailable -> default
        pass
    # Leave headroom for compiler-internal scratch / semaphores:
    #   128 MiB parts (v5e/v6e) -> ~102 MiB usable; 64 MiB (v7x) -> ~51 MiB.
    return max(16 << 20, min(cap - (12 << 20), int(cap * 0.8)))


def _estimate_vmem(tb, th, d_in, d_out, x_bytes, out_bytes) -> int:
    """Tight estimate for the configuration that actually runs
    (default double-buffered pipeline buffers + kernel-internal temps)."""
    return (
        2 * tb * d_in * x_bytes          # x tile (2 pipeline buffers)
        + tb * d_in * 2                  # in-kernel bf16 copy of the x tile
        + 2 * d_in * th * 2              # W1 hidden-slab, bf16
        + 2 * th * d_out * 2             # W2 hidden-slab, bf16
        + 2 * 8 * th * 4                 # b1 slab (sublane-padded), f32
        + 2 * 8 * d_out * 4              # b2, f32
        + 2 * tb * d_out * out_bytes     # output tile
        + tb * d_out * 4                 # f32 accumulator scratch
        + tb * th * (4 + 2)              # hidden slab: f32 epilogue + bf16 copy
    )


def _pick_tiles(batch, d_in, h_pad, d_out, x_bytes, out_bytes, tb_req, budget,
                forced_hidden_slab=None):
    # Batch-tile candidates: 128-aligned, descending.  Keep >= 2 batch blocks
    # whenever the batch allows it so the "parallel" axis has work for both of
    # v7x's TensorCores.
    if batch <= 128:
        tb_cands = [batch]
    else:
        top = min(_round_up(tb_req, 128), _round_up(batch, 128))
        top = min(top, max(128, _round_up(_cdiv(batch, 2), 128)))
        tb_cands, t = [], top
        while t >= 128:
            tb_cands.append(t)
            t //= 2
        if tb_cands[-1] != 128:
            tb_cands.append(128)

    # Hidden-slab candidates: divisors of h_pad that are multiples of 128,
    # largest first (= weights fully resident, fetched once, never streamed).
    if forced_hidden_slab is not None:
        th_cands = [forced_hidden_slab]
    elif h_pad % 128 == 0:
        th_cands = [t for t in range(h_pad, 127, -128) if h_pad % t == 0]
    else:
        th_cands = [h_pad]

    for th in th_cands:                  # prefer resident weights ...
        for tb in tb_cands:              # ... then the largest batch tile
            est = _estimate_vmem(tb, th, d_in, d_out, x_bytes, out_bytes)
            if est <= budget:
                return tb, th, est
    # Nothing fits the budget: fall back to the smallest configuration.
    # TODO(synk): also stream the input dim (D_in) for extremely wide inputs.
    tb, th = tb_cands[-1], th_cands[-1]
    return tb, th, _estimate_vmem(tb, th, d_in, d_out, x_bytes, out_bytes)


# ---------------------------------------------------------------------------
# Wrappers
# ---------------------------------------------------------------------------
def projection_head_apply(x, params, *, tb=512, out_dtype=None,
                          hidden_slab=None):
    """Fused Linear -> ReLU -> Linear using pre-packed params
    (see prepare_projection_params).  Returns (B, output_dim)."""
    w1p, b1p, w2p, b2p = params
    batch, d_in = x.shape
    d_in_w, h_pad = w1p.shape
    d_out = w2p.shape[1]
    assert d_in_w == d_in, "x / w1 input dims disagree"
    out_dtype = x.dtype if out_dtype is None else jnp.dtype(out_dtype)

    if hidden_slab is not None:
        assert hidden_slab % 128 == 0 and h_pad % hidden_slab == 0, (
            "hidden_slab must be a 128-multiple divisor of the padded hidden dim")

    budget = _usable_vmem_bytes()
    tb_eff, th, est = _pick_tiles(
        batch, d_in, h_pad, d_out,
        jnp.dtype(x.dtype).itemsize, jnp.dtype(out_dtype).itemsize,
        tb, budget, forced_hidden_slab=hidden_slab)

    grid = (_cdiv(batch, tb_eff), h_pad // th)
    # Tight estimate + fixed headroom, floored at the platform default and
    # capped at the per-generation usable budget.
    vmem_limit = int(min(max(est + (6 << 20), 32 << 20), budget))

    return pl.pallas_call(
        _projection_head_kernel,
        out_shape=jax.ShapeDtypeStruct((batch, d_out), out_dtype),
        grid_spec=pltpu.PrefetchScalarGridSpec(
            num_scalar_prefetch=0,
            grid=grid,
            in_specs=[
                # x tile: resident across the hidden-slab (reduction) axis.
                pl.BlockSpec((tb_eff, d_in), lambda i, k: (i, 0)),
                # W1 / b1 hidden-slabs.
                pl.BlockSpec((d_in, th), lambda i, k: (0, k)),
                pl.BlockSpec((1, th), lambda i, k: (0, k)),
                # W2 hidden-slab and grid-invariant b2.
                pl.BlockSpec((th, d_out), lambda i, k: (k, 0)),
                pl.BlockSpec((1, d_out), lambda i, k: (0, 0)),
            ],
            out_specs=pl.BlockSpec((tb_eff, d_out), lambda i, k: (i, 0)),
            scratch_shapes=[pltpu.VMEM((tb_eff, d_out), jnp.float32)],
        ),
        compiler_params=pltpu.CompilerParams(
            dimension_semantics=("parallel", "arbitrary"),
            vmem_limit_bytes=vmem_limit),
    )(x, w1p, b1p, w2p, b2p)


def projection_head(x, w1, b1, w2, b2, **kwargs):
    """Convenience one-shot wrapper (packs params on every call).  For repeated
    use, call prepare_projection_params() once and projection_head_apply()."""
    return projection_head_apply(
        x, prepare_projection_params(w1, b1, w2, b2), **kwargs)


# ---------------------------------------------------------------------------
# References
# ---------------------------------------------------------------------------
def reference_f32(x, w1, b1, w2, b2):
    h = jnp.maximum(x @ w1 + b1.reshape(1, -1), 0.0)
    return h @ w2 + b2.reshape(1, -1)


def reference_bf16(x, w1, b1, w2, b2):
    # Mirrors the kernel's numerics: bf16 operands, f32 accumulation.
    h = jnp.dot(x.astype(jnp.bfloat16), w1.astype(jnp.bfloat16),
                preferred_element_type=jnp.float32) + b1.reshape(1, -1)
    h = jnp.maximum(h, 0.0)
    out = jnp.dot(h.astype(jnp.bfloat16), w2.astype(jnp.bfloat16),
                  preferred_element_type=jnp.float32) + b2.reshape(1, -1)
    return out


if __name__ == "__main__":
    key = jax.random.PRNGKey(0)

    def init_linear(k, fan_in, fan_out):
        # torch nn.Linear default: U(-1/sqrt(fan_in), 1/sqrt(fan_in)).
        kw, kb = jax.random.split(k)
        bound = 1.0 / (fan_in ** 0.5)
        w = jax.random.uniform(kw, (fan_in, fan_out), jnp.float32, -bound, bound)
        b = jax.random.uniform(kb, (1, fan_out), jnp.float32, -bound, bound)
        return w, b

    cases = [
        # (B, D_in, H, D_out, hidden_slab)
        (256, 128, 256, 128, None),   # aligned dims: no padding at all, 2 batch blocks
        (256, 128, 256, 128, 128),    # same case, forcing the hidden-streaming path
        (8, 32, 64, 16, None),        # small / ragged dims: full-extent blocks
    ]
    for (B, D_in, H, D_out, hidden_slab) in cases:
        key, kx, k1, k2 = jax.random.split(key, 4)
        x = jax.random.normal(kx, (B, D_in), dtype=jnp.float32)
        w1, b1 = init_linear(k1, D_in, H)
        w2, b2 = init_linear(k2, H, D_out)

        params = prepare_projection_params(w1, b1, w2, b2)   # hoisted, one-time
        out = projection_head_apply(x, params, hidden_slab=hidden_slab)
        out = jax.block_until_ready(out)
        assert out.shape == (B, D_out)

        ref_bf16 = reference_bf16(x, w1, b1, w2, b2)
        assert jnp.allclose(out, ref_bf16, atol=1e-2, rtol=1e-2), (
            f"mismatch vs bf16-matched reference for case "
            f"{(B, D_in, H, D_out, hidden_slab)}")

        ref_f32 = reference_f32(x, w1, b1, w2, b2)
        assert jnp.allclose(out, ref_f32, atol=1e-1, rtol=1e-1), (
            f"mismatch vs f32 reference for case "
            f"{(B, D_in, H, D_out, hidden_slab)}")

    print("KERNEL_OK")
</pallas_src>

<mosaic_0001>
module attributes {stable_mosaic.version = 11 : i64} {
  func.func @_projection_head_kernel(%arg0: i32, %arg1: i32, %arg2: memref<128x128xf32, #tpu.memory_space<vmem>>, %arg3: memref<128x256xbf16, #tpu.memory_space<vmem>>, %arg4: memref<1x256xf32, #tpu.memory_space<vmem>>, %arg5: memref<256x128xbf16, #tpu.memory_space<vmem>>, %arg6: memref<1x128xf32, #tpu.memory_space<vmem>>, %arg7: memref<128x128xf32, #tpu.memory_space<vmem>>, %arg8: memref<128x128xf32, #tpu.memory_space<vmem>>) attributes {dimension_semantics = [#tpu.dimension_semantics<parallel>, #tpu.dimension_semantics<arbitrary>], iteration_bounds = array<i64: 2, 1>, scalar_prefetch = 0 : i64, scratch_operands = 1 : i64, tpu.core_type = #tpu.core_type<tc>, window_params = [{transform_indices = @transform_0, window_bounds = array<i64: 128, 128>}, {transform_indices = @transform_1, window_bounds = array<i64: 128, 256>}, {transform_indices = @transform_2, window_bounds = array<i64: 1, 256>}, {transform_indices = @transform_3, window_bounds = array<i64: 256, 128>}, {pipeline_mode = #tpu.pipeline_mode<synchronous>, transform_indices = @transform_4, window_bounds = array<i64: 1, 128>}, {transform_indices = @transform_5, window_bounds = array<i64: 128, 128>}]} {
    %c0_i32 = arith.constant 0 : i32
    %0 = arith.cmpi eq, %arg1, %c0_i32 : i32
    %1 = arith.extui %0 : i1 to i32
    %c0_i32_0 = arith.constant 0 : i32
    %2 = arith.cmpi ne, %1, %c0_i32_0 : i32
    scf.if %2 {
      %cst_16 = arith.constant 0.000000e+00 : f32
      %21 = vector.broadcast %cst_16 : f32 to vector<128x128xf32>
      %c0_17 = arith.constant 0 : index
      %c0_18 = arith.constant 0 : index
      %22 = vector.load %arg8[%c0_17, %c0_18] : memref<128x128xf32, #tpu.memory_space<vmem>>, vector<128x128xf32>
      tpu.vector_store %arg8[%c0_17, %c0_18], %21 {strides = array<i32>} : memref<128x128xf32, #tpu.memory_space<vmem>>, vector<128x128xf32>,
    } else {
    }
    %c0 = arith.constant 0 : index
    %c0_1 = arith.constant 0 : index
    %3 = vector.load %arg2[%c0, %c0_1] : memref<128x128xf32, #tpu.memory_space<vmem>>, vector<128x128xf32>
    %4 = arith.truncf %3 : vector<128x128xf32> to vector<128x128xbf16>
    %c0_2 = arith.constant 0 : index
    %c0_3 = arith.constant 0 : index
    %5 = vector.load %arg3[%c0_2, %c0_3] : memref<128x256xbf16, #tpu.memory_space<vmem>>, vector<128x256xbf16>
    %cst = arith.constant dense<0.000000e+00> : vector<128x256xf32>
    %6 = tpu.matmul %4, %5, %cst {dimension_numbers = #tpu.dot_dimension_numbers<[1], [0], [0], [1], [0, 0, 1, 1], [], []>} : vector<128x128xbf16>, vector<128x256xbf16>, vector<128x256xf32> -> vector<128x256xf32>
    %c0_4 = arith.constant 0 : index
    %c0_5 = arith.constant 0 : index
    %7 = vector.load %arg4[%c0_4, %c0_5] : memref<1x256xf32, #tpu.memory_space<vmem>>, vector<1x256xf32>
    %8 = vector.broadcast %7 : vector<1x256xf32> to vector<128x256xf32>
    %9 = arith.addf %6, %8 : vector<128x256xf32>
    %cst_6 = arith.constant 0.000000e+00 : f32
    %10 = vector.broadcast %cst_6 : f32 to vector<128x256xf32>
    %11 = arith.maximumf %9, %10 : vector<128x256xf32>
    %12 = arith.truncf %11 : vector<128x256xf32> to vector<128x256xbf16>
    %c0_7 = arith.constant 0 : index
    %c0_8 = arith.constant 0 : index
    %13 = vector.load %arg8[%c0_7, %c0_8] : memref<128x128xf32, #tpu.memory_space<vmem>>, vector<128x128xf32>
    %c0_9 = arith.constant 0 : index
    %c0_10 = arith.constant 0 : index
    %14 = vector.load %arg5[%c0_9, %c0_10] : memref<256x128xbf16, #tpu.memory_space<vmem>>, vector<256x128xbf16>
    %cst_11 = arith.constant dense<0.000000e+00> : vector<128x128xf32>
    %15 = tpu.matmul %12, %14, %cst_11 {dimension_numbers = #tpu.dot_dimension_numbers<[1], [0], [0], [1], [0, 0, 1, 1], [], []>} : vector<128x256xbf16>, vector<256x128xbf16>, vector<128x128xf32> -> vector<128x128xf32>
    %16 = arith.addf %13, %15 : vector<128x128xf32>
    %c0_12 = arith.constant 0 : index
    %c0_13 = arith.constant 0 : index
    %17 = vector.load %arg8[%c0_12, %c0_13] : memref<128x128xf32, #tpu.memory_space<vmem>>, vector<128x128xf32>
    tpu.vector_store %arg8[%c0_12, %c0_13], %16 {strides = array<i32>} : memref<128x128xf32, #tpu.memory_space<vmem>>, vector<128x128xf32>,
    %c0_i32_14 = arith.constant 0 : i32
    %18 = arith.cmpi eq, %arg1, %c0_i32_14 : i32
    %19 = arith.extui %18 : i1 to i32
    %c0_i32_15 = arith.constant 0 : i32
    %20 = arith.cmpi ne, %19, %c0_i32_15 : i32
    scf.if %20 {
      %c0_16 = arith.constant 0 : index
      %c0_17 = arith.constant 0 : index
      %21 = vector.load %arg8[%c0_16, %c0_17] : memref<128x128xf32, #tpu.memory_space<vmem>>, vector<128x128xf32>
      %c0_18 = arith.constant 0 : index
      %c0_19 = arith.constant 0 : index
      %22 = vector.load %arg6[%c0_18, %c0_19] : memref<1x128xf32, #tpu.memory_space<vmem>>, vector<1x128xf32>
      %23 = vector.broadcast %22 : vector<1x128xf32> to vector<128x128xf32>
      %24 = arith.addf %21, %23 : vector<128x128xf32>
      %c0_20 = arith.constant 0 : index
      %c0_21 = arith.constant 0 : index
      %25 = vector.load %arg7[%c0_20, %c0_21] : memref<128x128xf32, #tpu.memory_space<vmem>>, vector<128x128xf32>
      tpu.vector_store %arg7[%c0_20, %c0_21], %24 {strides = array<i32>} : memref<128x128xf32, #tpu.memory_space<vmem>>, vector<128x128xf32>,
    } else {
    }
    return
  }
  func.func @transform_0(%arg0: i32, %arg1: i32) -> (i32, i32) {
    %c0_i32 = arith.constant 0 : i32
    %c0_i32_0 = arith.constant 0 : i32
    return %arg0, %c0_i32 : i32, i32
  }
  func.func @transform_1(%arg0: i32, %arg1: i32) -> (i32, i32) {
    %c0_i32 = arith.constant 0 : i32
    %c0_i32_0 = arith.constant 0 : i32
    return %c0_i32, %arg1 : i32, i32
  }
  func.func @transform_2(%arg0: i32, %arg1: i32) -> (i32, i32) {
    %c0_i32 = arith.constant 0 : i32
    %c0_i32_0 = arith.constant 0 : i32
    return %c0_i32, %arg1 : i32, i32
  }
  func.func @transform_3(%arg0: i32, %arg1: i32) -> (i32, i32) {
    %c0_i32 = arith.constant 0 : i32
    %c0_i32_0 = arith.constant 0 : i32
    return %arg1, %c0_i32 : i32, i32
  }
  func.func @transform_4(%arg0: i32, %arg1: i32) -> (i32, i32) {
    %c0_i32 = arith.constant 0 : i32
    %c0_i32_0 = arith.constant 0 : i32
    %c0_i32_1 = arith.constant 0 : i32
    return %c0_i32, %c0_i32_0 : i32, i32
  }
  func.func @transform_5(%arg0: i32, %arg1: i32) -> (i32, i32) {
    %c0_i32 = arith.constant 0 : i32
    %c0_i32_0 = arith.constant 0 : i32
    return %arg0, %c0_i32 : i32, i32
  }
}

</mosaic_0001>

<llo_original>
// kernel: tpu_custom_call.1
$region0: #{tpu_custom_call.1}
  #allocation0 [shape = 'u32[]', space=smem, size = 0x4, offset = 0x4, fixed_abs, tag = 'smem constant byte address 0x4 - core index']
  #allocation1 [shape = 'u32[144,128]{1,0:T(1,128)}', space=vmem, size = 0x12000, scoped, tag = 'internal scratch']
  #allocation2 [shape = 'f32[128,128]{1,0:T(8,128)}', space=vmem, size = 0x10000, scoped, tag = 'scratch operand']
  %s0 = inlined_call_operand.hbm [shape: f32[256,128], index: 0, kind: input, shape index: {}]
  %s1 = inlined_call_operand.hbm [shape: bf16[128,256], index: 1, kind: input, shape index: {}]
  %s2 = inlined_call_operand.vmem [shape: f32[1,256], index: 2, kind: input, shape index: {}]
  %s3 = inlined_call_operand.hbm [shape: bf16[256,128], index: 3, kind: input, shape index: {}]
  %s4 = inlined_call_operand.vmem [shape: f32[1,128], index: 4, kind: input, shape index: {}]
  %s5 = inlined_call_operand.hbm [shape: f32[256,128], index: 5, kind: output, shape index: {}]
  %s6 = sld [smem:[#allocation0]]
  $region73: #{tpu_custom_call.1} parent=0
    _
  %s8 = ssub.s32 1, %s6
  %s9 = scalar_select 0, %s8, %s6
  $region1: #{tpu_custom_call.1} parent=0
    #allocation3 [shape = 'u8[131072]{0}', space=vmem, size = 0x20000, scoped, tag = 'input window, operand 0']
    #allocation4 [shape = 's32[2]{0}', space=sflag, size = 0x8, scoped, tag = 'scoped memory for tpu_custom_call.1']
    #allocation5 [shape = 's32[2]{0}', space=sflag, size = 0x8, scoped, tag = 'scoped memory for tpu_custom_call.1']
    #allocation6 [shape = 'u8[65536]{0}', space=vmem, size = 0x10000, scoped, tag = 'input window, operand 1, single buffered']
    #allocation7 [shape = 's32[1]{0}', space=sflag, size = 0x4, scoped, tag = 'scoped memory for tpu_custom_call.1']
    #allocation8 [shape = 'u8[65536]{0}', space=vmem, size = 0x10000, scoped, tag = 'input window, operand 3, single buffered']
    #allocation9 [shape = 'u8[131072]{0}', space=vmem, size = 0x20000, scoped, tag = 'output window, operand 0']
    %10 = vsyncpa [#allocation4], 0
    %s11 = scalar_lea.sflag [#allocation4], 1
    %12 = vsyncpa %s11, 0
    %13 = vsyncpa [#allocation7], 0
    %14 = vsyncpa [#allocation5], 0
    %s15 = scalar_lea.sflag [#allocation5], 1
    %16 = vsyncpa %s15, 0
    loop: start=0, step=1, limit=4
    $region2: #{tpu_custom_call.1} parent=1 // loop_pre_header
      _
    $region3: #{tpu_custom_call.1} parent=1 // loop_header
      %s18 = sphi 0, %s22
      %p19 = scmp.ge.s32.totalorder %s18, 4
      %s25 = sphi 0, %s37
      %s26 = sphi 0, %s33
      %s27 = sphi 0, %s25
      %s28 = sphi 0, %s26
      %s29 = sphi 0, %s27
      %s30 = sphi 0, %s28
      %s40 = sphi 0, %s42
      %s43 = sphi 0, %s40
      %s44 = sphi 0, %s43
      %s60 = sphi 0, %s44
      %s66 = sphi 0, %s68
      %s69 = sphi 0, %s66
      %s70 = sphi 0, %s69
      %s86 = sphi 0, %s70
      %s92 = sphi 0, %s94
      %s95 = sphi 0, %s92
      %s96 = sphi 0, %s95
      %s112 = sphi 0, %s96
      %s118 = sphi 0, %s120
      %s121 = sphi 0, %s118
      %s122 = sphi 0, %s121
      %s138 = sphi 0, %s122
      %s142 = sphi 0, %s142
      %s144 = sphi 0, %s142
      %s145 = sphi 0, %s144
      %s159 = sphi 0, %s145
      %s165 = sphi 0, %s167
      %s168 = sphi 0, %s165
      %s169 = sphi 0, %s168
      %s185 = sphi 0, %s169
    $region4: #{tpu_custom_call.1} parent=1 // loop_header_branch
      %21 = sbr.rel (%p19) target = $region8
    $region5: #{tpu_custom_call.1} parent=1 // loop_body
      %s23 = ssub.s32 %s18, 1
      %s24 = ssub.s32 %s18, 2
      %s31 = sadd.s32 1, %s26
      %p32 = scmp.ge.s32.totalorder %s31, 1
      %s33 = scalar_select %p32, 0, %s31
      %s34 = sadd.s32 1, %s25
      %s35 = scalar_select %p32, %s34, %s25
      %p36 = scmp.ge.s32.totalorder %s35, 2
      %s37 = scalar_select %p36, 0, %s35
      %s38 = ssub.s32 %s25, %s37
      %p39 = scmp.eq.s32.totalorder %s38, 0
      %s41 = sadd.s32 %s40, 1
      %s42 = scalar_select %p39, %s40, %s41
      %p45 = pneg %p39
      %p46 = scmp.eq.s32.totalorder %s18, 1
      %p47 = por %p45, %p46
      %p48 = scmp.ne.s32.totalorder %s40, %s43
      %p49 = scmp.eq.s32.totalorder %s18, 0
      %p50 = por %p48, %p49
      %p51 = scmp.ne.s32.totalorder %s40, %s43
      %p52 = scmp.eq.s32.totalorder %s23, 1
      %p53 = por %p51, %p52
      %p54 = scmp.ne.s32.totalorder %s43, %s44
      %p55 = scmp.eq.s32.totalorder %s23, 0
      %p56 = por %p54, %p55
      %p57 = scmp.ne.s32.totalorder %s43, %s44
      %p58 = scmp.eq.s32.totalorder %s24, 1
      %p59 = por %p57, %p58
      %p61 = scmp.ne.s32.totalorder %s44, %s60
      %p62 = scmp.eq.s32.totalorder %s24, 0
      %p63 = por %p61, %p62
      %s64 = ssub.s32 %s26, %s33
      %p65 = scmp.eq.s32.totalorder %s64, 0
      %s67 = sadd.s32 %s66, 1
      %s68 = scalar_select %p65, %s66, %s67
      %p71 = pneg %p65
      %p72 = scmp.eq.s32.totalorder %s18, 1
      %p73 = por %p71, %p72
      %p74 = scmp.ne.s32.totalorder %s66, %s69
      %p75 = scmp.eq.s32.totalorder %s18, 0
      %p76 = por %p74, %p75
      %p77 = scmp.ne.s32.totalorder %s66, %s69
      %p78 = scmp.eq.s32.totalorder %s23, 1
      %p79 = por %p77, %p78
      %p80 = scmp.ne.s32.totalorder %s69, %s70
      %p81 = scmp.eq.s32.totalorder %s23, 0
      %p82 = por %p80, %p81
      %p83 = scmp.ne.s32.totalorder %s69, %s70
      %p84 = scmp.eq.s32.totalorder %s24, 1
      %p85 = por %p83, %p84
      %p87 = scmp.ne.s32.totalorder %s70, %s86
      %p88 = scmp.eq.s32.totalorder %s24, 0
      %p89 = por %p87, %p88
      %s90 = ssub.s32 %s26, %s33
      %p91 = scmp.eq.s32.totalorder %s90, 0
      %s93 = sadd.s32 %s92, 1
      %s94 = scalar_select %p91, %s92, %s93
      %p97 = pneg %p91
      %p98 = scmp.eq.s32.totalorder %s18, 1
      %p99 = por %p97, %p98
      %p100 = scmp.ne.s32.totalorder %s92, %s95
      %p101 = scmp.eq.s32.totalorder %s18, 0
      %p102 = por %p100, %p101
      %p103 = scmp.ne.s32.totalorder %s92, %s95
      %p104 = scmp.eq.s32.totalorder %s23, 1
      %p105 = por %p103, %p104
      %p106 = scmp.ne.s32.totalorder %s95, %s96
      %p107 = scmp.eq.s32.totalorder %s23, 0
      %p108 = por %p106, %p107
      %p109 = scmp.ne.s32.totalorder %s95, %s96
      %p110 = scmp.eq.s32.totalorder %s24, 1
      %p111 = por %p109, %p110
      %p113 = scmp.ne.s32.totalorder %s96, %s112
      %p114 = scmp.eq.s32.totalorder %s24, 0
      %p115 = por %p113, %p114
      %s116 = ssub.s32 %s26, %s33
      %p117 = scmp.eq.s32.totalorder %s116, 0
      %s119 = sadd.s32 %s118, 1
      %s120 = scalar_select %p117, %s118, %s119
      %p123 = pneg %p117
      %p124 = scmp.eq.s32.totalorder %s18, 1
      %p125 = por %p123, %p124
      %p126 = scmp.ne.s32.totalorder %s118, %s121
      %p127 = scmp.eq.s32.totalorder %s18, 0
      %p128 = por %p126, %p127
      %p129 = scmp.ne.s32.totalorder %s118, %s121
      %p130 = scmp.eq.s32.totalorder %s23, 1
      %p131 = por %p129, %p130
      %p132 = scmp.ne.s32.totalorder %s121, %s122
      %p133 = scmp.eq.s32.totalorder %s23, 0
      %p134 = por %p132, %p133
      %p135 = scmp.ne.s32.totalorder %s121, %s122
      %p136 = scmp.eq.s32.totalorder %s24, 1
      %p137 = por %p135, %p136
      %p139 = scmp.ne.s32.totalorder %s122, %s138
      %p140 = scmp.eq.s32.totalorder %s24, 0
      %p141 = por %p139, %p140
      %s143 = sadd.s32 %s142, 1
      %p146 = scmp.eq.s32.totalorder %s18, 1
      %p147 = scmp.ne.s32.totalorder %s142, %s144
      %p148 = scmp.eq.s32.totalorder %s18, 0
      %p149 = por %p147, %p148
      %p150 = scmp.ne.s32.totalorder %s142, %s144
      %p151 = scmp.eq.s32.totalorder %s23, 1
      %p152 = por %p150, %p151
      %p153 = scmp.ne.s32.totalorder %s144, %s145
      %p154 = scmp.eq.s32.totalorder %s23, 0
      %p155 = por %p153, %p154
      %p156 = scmp.ne.s32.totalorder %s144, %s145
      %p157 = scmp.eq.s32.totalorder %s24, 1
      %p158 = por %p156, %p157
      %p160 = scmp.ne.s32.totalorder %s145, %s159
      %p161 = scmp.eq.s32.totalorder %s24, 0
      %p162 = por %p160, %p161
      %s163 = ssub.s32 %s25, %s37
      %p164 = scmp.eq.s32.totalorder %s163, 0
      %s166 = sadd.s32 %s165, 1
      %s167 = scalar_select %p164, %s165, %s166
      %p170 = pneg %p164
      %p171 = scmp.eq.s32.totalorder %s18, 1
      %p172 = por %p170, %p171
      %p173 = scmp.ne.s32.totalorder %s165, %s168
      %p174 = scmp.eq.s32.totalorder %s18, 0
      %p175 = por %p173, %p174
      %p176 = scmp.ne.s32.totalorder %s165, %s168
      %p177 = scmp.eq.s32.totalorder %s23, 1
      %p178 = por %p176, %p177
      %p179 = scmp.ne.s32.totalorder %s168, %s169
      %p180 = scmp.eq.s32.totalorder %s23, 0
      %p181 = por %p179, %p180
      %p182 = scmp.ne.s32.totalorder %s168, %s169
      %p183 = scmp.eq.s32.totalorder %s24, 1
      %p184 = por %p182, %p183
      %p186 = scmp.ne.s32.totalorder %s169, %s185
      %p187 = scmp.eq.s32.totalorder %s24, 0
      %p188 = por %p186, %p187
      %p189 = scmp.le.s32.totalorder 1, %s18
      %p190 = scmp.lt.s32.totalorder %s18, 3
      %p191 = pnand %p189, %p190
      %p192 = pneg %p191
      // Predicated region
      $region9: #{tpu_custom_call.1} parent=5 // pred_check
        _
      $region10: #{tpu_custom_call.1} parent=5 // pred_check_branch
        %194 = sbr.rel (%p191) target = $region12
      $region11: #{tpu_custom_call.1} parent=5 // pred_region
        %s195 = ssub.s32 %s18, 1
        // Predicated region
        $region13: #{tpu_custom_call.1} parent=11 // pred_check
          %p196 = pneg %p82
        $region14: #{tpu_custom_call.1} parent=11 // pred_check_branch
          %198 = sbr.rel (%p196) target = $region16
        $region15: #{tpu_custom_call.1} parent=11 // pred_region
          %s199 = smul.u32 2, %s28
          %s201 = ssub.s32 2048, 2048
          %202 = vsyncadd [#allocation7], %s201
          %s203 = smul.addr %s199, 64
          %s204 = scalar_lea.hbm %s1, %s203
          %s205 = sshll.u32 [#allocation6], 4
          %s206 = int_to_ptr.vmem [resolvable:$true] %s205
          %211 = dma.hbm_to_vmem [thread:$0]  %s204, 2048, %s206, [#allocation7], 128, 128, 8
        $region16: #{tpu_custom_call.1} parent=11 // pred_fallthru
          _
        // Predicated region
        $region17: #{tpu_custom_call.1} parent=11 // pred_check
          %p212 = pneg %p108
        $region18: #{tpu_custom_call.1} parent=11 // pred_check_branch
          %214 = sbr.rel (%p212) target = $region20
        $region19: #{tpu_custom_call.1} parent=11 // pred_region
          %s215 = smul.u32 2, %s28
          %p216 = scmp.lt.s32.totalorder %s215, 1
          %s217 = scalar_select %p216, %s215, 1
          %s218 = scalar_lea.vmem %s2, %s217
          %s219 = smul.u32 2, %s28
        $region20: #{tpu_custom_call.1} parent=11 // pred_fallthru
          _
        // Predicated region
        $region21: #{tpu_custom_call.1} parent=11 // pred_check
          %p220 = pneg %p134
        $region22: #{tpu_custom_call.1} parent=11 // pred_check_branch
          %222 = sbr.rel (%p220) target = $region24
        $region23: #{tpu_custom_call.1} parent=11 // pred_region
          %s223 = smul.u32 32, %s28
          %s225 = ssub.s32 2048, 2048
          %226 = vsyncadd [#allocation7], %s225
          %s227 = smul.addr %s223, 64
          %s228 = scalar_lea.hbm %s3, %s227
          %s229 = sshll.u32 [#allocation8], 4
          %s230 = int_to_ptr.vmem [resolvable:$true] %s229
          %235 = dma.hbm_to_vmem [thread:$0]  %s228, 2048, %s230, [#allocation7], 64, 64, 4
        $region24: #{tpu_custom_call.1} parent=11 // pred_fallthru
          _
        // Predicated region
        $region25: #{tpu_custom_call.1} parent=11 // pred_check
          %p236 = pneg %p155
        $region26: #{tpu_custom_call.1} parent=11 // pred_check_branch
          %238 = sbr.rel (%p236) target = $region28
        $region27: #{tpu_custom_call.1} parent=11 // pred_region
          _
        $region28: #{tpu_custom_call.1} parent=11 // pred_fallthru
          _
      $region12: #{tpu_custom_call.1} parent=5 // pred_fallthru
        _
      %p239 = scmp.lt.s32.totalorder %s18, 2
      // Predicated region
      $region29: #{tpu_custom_call.1} parent=5 // pred_check
        %p240 = pneg %p239
      $region30: #{tpu_custom_call.1} parent=5 // pred_check_branch
        %242 = sbr.rel (%p240) target = $region32
      $region31: #{tpu_custom_call.1} parent=5 // pred_region
        // Predicated region
        $region33: #{tpu_custom_call.1} parent=31 // pred_check
          %p243 = pneg %p50
        $region34: #{tpu_custom_call.1} parent=31 // pred_check_branch
          %245 = sbr.rel (%p243) target = $region36
        $region35: #{tpu_custom_call.1} parent=31 // pred_region
          %s246 = sand.u32 %s40, 1
          %s247 = scalar_lea.sflag [#allocation4], %s246
          %s248 = sand.u32 %s40, 1
          %s249 = smul.addr %s248, 128
          %s250 = scalar_lea.vmem [#allocation3], %s249
          %s251 = smul.u32 16, %s25
          %s253 = ssub.s32 2048, 2048
          %254 = vsyncadd %s247, %s253
          %s255 = smul.addr %s251, 128
          %s256 = scalar_lea.hbm %s0, %s255
          %s257 = sshll.u32 %s250, 4
          %s258 = int_to_ptr.vmem [resolvable:$true] %s257
          %263 = dma.hbm_to_vmem [thread:$0]  %s256, 2048, %s258, %s247, 128, 128, 8
        $region36: #{tpu_custom_call.1} parent=31 // pred_fallthru
          _
      $region32: #{tpu_custom_call.1} parent=5 // pred_fallthru
        _
      %p264 = scmp.le.s32.totalorder 1, %s18
      %p265 = scmp.lt.s32.totalorder %s18, 3
      %p266 = pnand %p264, %p265
      %p267 = pneg %p266
      // Predicated region
      $region37: #{tpu_custom_call.1} parent=5 // pred_check
        _
      $region38: #{tpu_custom_call.1} parent=5 // pred_check_branch
        %269 = sbr.rel (%p266) target = $region40
      $region39: #{tpu_custom_call.1} parent=5 // pred_region
        %s270 = ssub.s32 %s18, 1
        %s271 = sand.u32 %s43, 1
        %s272 = scalar_lea.sflag [#allocation4], %s271
        %s273 = sand.u32 %s43, 1
        %s274 = smul.addr %s273, 128
        %s275 = scalar_lea.vmem [#allocation3], %s274
        // Predicated region
        $region41: #{tpu_custom_call.1} parent=39 // pred_check
          %p276 = pneg %p56
        $region42: #{tpu_custom_call.1} parent=39 // pred_check_branch
          %278 = sbr.rel (%p276) target = $region44
        $region43: #{tpu_custom_call.1} parent=39 // pred_region
          %279 = dma.done %s272, 2048
        $region44: #{tpu_custom_call.1} parent=39 // pred_fallthru
          _
        // Predicated region
        $region45: #{tpu_custom_call.1} parent=39 // pred_check
          %p280 = pneg %p82
        $region46: #{tpu_custom_call.1} parent=39 // pred_check_branch
          %282 = sbr.rel (%p280) target = $region48
        $region47: #{tpu_custom_call.1} parent=39 // pred_region
          %283 = dma.done [#allocation7], 2048
        $region48: #{tpu_custom_call.1} parent=39 // pred_fallthru
          _
        // Predicated region
        $region49: #{tpu_custom_call.1} parent=39 // pred_check
          %p284 = pneg %p134
        $region50: #{tpu_custom_call.1} parent=39 // pred_check_branch
          %286 = sbr.rel (%p284) target = $region52
        $region51: #{tpu_custom_call.1} parent=39 // pred_region
          %287 = dma.done [#allocation7], 2048
        $region52: #{tpu_custom_call.1} parent=39 // pred_fallthru
          _
        %s288 = sand.u32 %s43, 1
        %s289 = scalar_lea.sflag [#allocation4], %s288
        %s290 = sand.u32 %s43, 1
        %s291 = smul.addr %s290, 128
        %s292 = scalar_lea.vmem [#allocation3], %s291
        %p293 = pneg %p56
        %p294 = pneg %p53
        %p295 = pneg %p82
        %p296 = pneg %p79
        %s297 = smul.u32 2, %s28
        %p298 = scmp.lt.s32.totalorder %s297, 1
        %s299 = scalar_select %p298, %s297, 1
        %s300 = scalar_lea.vmem %s2, %s299
        %p301 = pneg %p108
        %p302 = pneg %p105
        %p303 = pneg %p134
        %p304 = pneg %p131
        %p305 = pneg %p155
        %p306 = pneg %p152
        %p307 = pneg %p181
        %p308 = pneg %p178
        %s309 = sand.u32 %s168, 1
        %s310 = scalar_lea.sflag [#allocation5], %s309
        %s311 = sand.u32 %s168, 1
        %s312 = smul.addr %s311, 128
        %s313 = scalar_lea.vmem [#allocation9], %s312
        %s314 = smul.u32 16, %s27
        %s315 = smul.u32 2, %s28
        %s316 = smul.u32 2, %s28
        %p317 = scmp.lt.s32.totalorder %s316, 1
        %s318 = scalar_select %p317, %s316, 1
        %s319 = scalar_lea.vmem %s2, %s318
        %s320 = smul.u32 2, %s28
        %s321 = smul.u32 32, %s28
        %s322 = smul.u32 16, %s27
        %p324 = scmp.eq.s32.totalorder %s28, 0
        // Predicated region
        $region53: #{tpu_custom_call.1} parent=39 // pred_check
          %p325 = pneg %p324
        $region54: #{tpu_custom_call.1} parent=39 // pred_check_branch
          %327 = sbr.rel (%p325) target = $region56
        $region55: #{tpu_custom_call.1} parent=39 // pred_region
          %328 = vst [vmem:[#allocation2] sm:$0xff] 0.0
          %329 = vst [vmem:[#allocation2 + $0x8] sm:$0xff] 0.0
          %330 = vst [vmem:[#allocation2 + $0x10] sm:$0xff] 0.0
          %331 = vst [vmem:[#allocation2 + $0x18] sm:$0xff] 0.0
          %332 = vst [vmem:[#allocation2 + $0x20] sm:$0xff] 0.0
          %333 = vst [vmem:[#allocation2 + $0x28] sm:$0xff] 0.0
          %334 = vst [vmem:[#allocation2 + $0x30] sm:$0xff] 0.0
          %335 = vst [vmem:[#allocation2 + $0x38] sm:$0xff] 0.0
          %336 = vst [vmem:[#allocation2 + $0x40] sm:$0xff] 0.0
          %337 = vst [vmem:[#allocation2 + $0x48] sm:$0xff] 0.0
          %338 = vst [vmem:[#allocation2 + $0x50] sm:$0xff] 0.0
          %339 = vst [vmem:[#allocation2 + $0x58] sm:$0xff] 0.0
          %340 = vst [vmem:[#allocation2 + $0x60] sm:$0xff] 0.0
          %341 = vst [vmem:[#allocation2 + $0x68] sm:$0xff] 0.0
          %342 = vst [vmem:[#allocation2 + $0x70] sm:$0xff] 0.0
          %343 = vst [vmem:[#allocation2 + $0x78] sm:$0xff] 0.0
        $region56: #{tpu_custom_call.1} parent=39 // pred_fallthru
          _
        %v344 = vld [vmem:[%s275] sm:$0xff]
        %v345 = vld [vmem:[%s275 + $0x8] sm:$0xff]
        %v346 = vld [vmem:[%s275 + $0x10] sm:$0xff]
        %v347 = vld [vmem:[%s275 + $0x18] sm:$0xff]
        %v348 = vld [vmem:[%s275 + $0x20] sm:$0xff]
        %v349 = vld [vmem:[%s275 + $0x28] sm:$0xff]
        %v350 = vld [vmem:[%s275 + $0x30] sm:$0xff]
        %v351 = vld [vmem:[%s275 + $0x38] sm:$0xff]
        %v352 = vld [vmem:[%s275 + $0x40] sm:$0xff]
        %v353 = vld [vmem:[%s275 + $0x48] sm:$0xff]
        %v354 = vld [vmem:[%s275 + $0x50] sm:$0xff]
        %v355 = vld [vmem:[%s275 + $0x58] sm:$0xff]
        %v356 = vld [vmem:[%s275 + $0x60] sm:$0xff]
        %v357 = vld [vmem:[%s275 + $0x68] sm:$0xff]
        %v358 = vld [vmem:[%s275 + $0x70] sm:$0xff]
        %v359 = vld [vmem:[%s275 + $0x78] sm:$0xff]
        %v360 = vpack.c.bf16 %v345, %v344
        %v361 = vpack.c.bf16 %v347, %v346
        %v362 = vpack.c.bf16 %v349, %v348
        %v363 = vpack.c.bf16 %v351, %v350
        %v364 = vpack.c.bf16 %v353, %v352
        %v365 = vpack.c.bf16 %v355, %v354
        %v366 = vpack.c.bf16 %v357, %v356
        %v367 = vpack.c.bf16 %v359, %v358
        %v368 = vld [vmem:[#allocation6] sm:$0xff]
        %v369 = vld [vmem:[#allocation6 + $0x8] sm:$0xff]
        %v370 = vld [vmem:[#allocation6 + $0x10] sm:$0xff]
        %v371 = vld [vmem:[#allocation6 + $0x18] sm:$0xff]
        %v372 = vld [vmem:[#allocation6 + $0x20] sm:$0xff]
        %v373 = vld [vmem:[#allocation6 + $0x28] sm:$0xff]
        %v374 = vld [vmem:[#allocation6 + $0x30] sm:$0xff]
        %v375 = vld [vmem:[#allocation6 + $0x38] sm:$0xff]
        %v376 = vld [vmem:[#allocation6 + $0x40] sm:$0xff]
        %v377 = vld [vmem:[#allocation6 + $0x48] sm:$0xff]
        %v378 = vld [vmem:[#allocation6 + $0x50] sm:$0xff]
        %v379 = vld [vmem:[#allocation6 + $0x58] sm:$0xff]
        %v380 = vld [vmem:[#allocation6 + $0x60] sm:$0xff]
        %v381 = vld [vmem:[#allocation6 + $0x68] sm:$0xff]
        %v382 = vld [vmem:[#allocation6 + $0x70] sm:$0xff]
        %v383 = vld [vmem:[#allocation6 + $0x78] sm:$0xff]
        %v384 = vld [vmem:[%s319] sm:$0x3]
        %v386 = vlaneseq
        %v387 = vshrl.u32 %v386, 7
        %v388 = vsub.s32 0, %v387
        %v389 = vrot.slane %v384, %v388
        %v390 = vlaneseq
        %v391 = vshrl.u32 %v390, 7
        %v392 = vsub.s32 1, %v391
        %v393 = vrot.slane %v384, %v392
        %v412 = vunpack.c.l.b16 %v368
        %v413 = vunpack.c.h.b16 %v368
        %v414 = vunpack.c.l.b16 %v369
        %v415 = vunpack.c.h.b16 %v369
        %v416 = vunpack.c.l.b16 %v370
        %v417 = vunpack.c.h.b16 %v370
        %v418 = vunpack.c.l.b16 %v371
        %v419 = vunpack.c.h.b16 %v371
        %v420 = vunpack.c.l.b16 %v372
        %v421 = vunpack.c.h.b16 %v372
        %v422 = vunpack.c.l.b16 %v373
        %v423 = vunpack.c.h.b16 %v373
        %v424 = vunpack.c.l.b16 %v374
        %v425 = vunpack.c.h.b16 %v374
        %v426 = vunpack.c.l.b16 %v375
        %v427 = vunpack.c.h.b16 %v375
        %v428 = vunpack.c.l.b16 %v376
        %v429 = vunpack.c.h.b16 %v376
        %v430 = vunpack.c.l.b16 %v377
        %v431 = vunpack.c.h.b16 %v377
        %v432 = vunpack.c.l.b16 %v378
        %v433 = vunpack.c.h.b16 %v378
        %v434 = vunpack.c.l.b16 %v379
        %v435 = vunpack.c.h.b16 %v379
        %v436 = vunpack.c.l.b16 %v380
        %v437 = vunpack.c.h.b16 %v380
        %v438 = vunpack.c.l.b16 %v381
        %v439 = vunpack.c.h.b16 %v381
        %v440 = vunpack.c.l.b16 %v382
        %v441 = vunpack.c.h.b16 %v382
        %v442 = vunpack.c.l.b16 %v383
        %v443 = vunpack.c.h.b16 %v383
        %v444 = vpack.c.b16 %v414, %v412
        %v445 = vpack.c.b16 %v415, %v413
        %v446 = vpack.c.b16 %v418, %v416
        %v447 = vpack.c.b16 %v419, %v417
        %v448 = vpack.c.b16 %v422, %v420
        %v449 = vpack.c.b16 %v423, %v421
        %v450 = vpack.c.b16 %v426, %v424
        %v451 = vpack.c.b16 %v427, %v425
        %v452 = vpack.c.b16 %v430, %v428
        %v453 = vpack.c.b16 %v431, %v429
        %v454 = vpack.c.b16 %v434, %v432
        %v455 = vpack.c.b16 %v435, %v433
        %v456 = vpack.c.b16 %v438, %v436
        %v457 = vpack.c.b16 %v439, %v437
        %v458 = vpack.c.b16 %v442, %v440
        %v459 = vpack.c.b16 %v443, %v441
        %476 = vmatprep.subr.bf16.mxu0 %v459
        %477 = vmatpush1.bf16.msra.mxu0 %v458
        %478 = vmatprep.subr.bf16.mxu0 %v457
        %479 = vmatpush1.bf16.msra.mxu0 %v456
        %480 = vmatprep.subr.bf16.mxu0 %v455
        %481 = vmatpush1.bf16.msra.mxu0 %v454
        %482 = vmatprep.subr.bf16.mxu0 %v453
        %483 = vmatpush1.bf16.msra.mxu0 %v452
        %484 = vmatprep.subr.bf16.mxu0 %v451
        %485 = vmatpush1.bf16.msra.mxu0 %v450
        %486 = vmatprep.subr.bf16.mxu0 %v449
        %487 = vmatpush1.bf16.msra.mxu0 %v448
        %488 = vmatprep.subr.bf16.mxu0 %v447
        %489 = vmatpush1.bf16.msra.mxu0 %v446
        %490 = vmatprep.subr.bf16.mxu0 %v445
        %491 = vmatpush1.bf16.msra.mxu0 %v444
        %492 = vmatprep.subr.bf16.mxu0 0
        %493 = vmatpush2.bf16.msra.mxu0 0
        %494 = vmatprep.subr.bf16.mxu0 0
        %495 = vmatpush2.bf16.msra.mxu0 0
        %496 = vmatprep.subr.bf16.mxu0 0
        %497 = vmatpush2.bf16.msra.mxu0 0
        %498 = vmatprep.subr.bf16.mxu0 0
        %499 = vmatpush2.bf16.msra.mxu0 0
        %500 = vmatprep.subr.bf16.mxu0 0
        %501 = vmatpush2.bf16.msra.mxu0 0
        %502 = vmatprep.subr.bf16.mxu0 0
        %503 = vmatpush2.bf16.msra.mxu0 0
        %504 = vmatprep.subr.bf16.mxu0 0
        %505 = vmatpush2.bf16.msra.mxu0 0
        %506 = vmatprep.subr.bf16.mxu0 0
        %507 = vmatpush2.bf16.msra.mxu0 0
        %508 = vmatprep.mubr.bf16.mxu0 0
        %509 = vmatmul.mubr.bf16.gmra.mxu0 %v360
        %v510 = vpop.f32.mrf.mxu0
        %v511 = vadd.f32 %v389, %v510
        %v512 = vpop.f32.mrf.mxu0
        %v513 = vadd.f32 %v393, %v512
        %v514 = vpop.f32.mrf.mxu0
        %v515 = vadd.f32 %v389, %v514
        %v516 = vpop.f32.mrf.mxu0
        %v517 = vadd.f32 %v393, %v516
        %518 = vmatprep.mubr.bf16.mxu0 0
        %519 = vmatmul.mubr.bf16.gmra.mxu0 %v361
        %v520 = vpop.f32.mrf.mxu0
        %v521 = vadd.f32 %v389, %v520
        %v522 = vpop.f32.mrf.mxu0
        %v523 = vadd.f32 %v393, %v522
        %v524 = vpop.f32.mrf.mxu0
        %v525 = vadd.f32 %v389, %v524
        %v526 = vpop.f32.mrf.mxu0
        %v527 = vadd.f32 %v393, %v526
        %528 = vmatprep.mubr.bf16.mxu0 0
        %529 = vmatmul.mubr.bf16.gmra.mxu0 %v362
        %v530 = vpop.f32.mrf.mxu0
        %v531 = vadd.f32 %v389, %v530
        %v532 = vpop.f32.mrf.mxu0
        %v533 = vadd.f32 %v393, %v532
        %v534 = vpop.f32.mrf.mxu0
        %v535 = vadd.f32 %v389, %v534
        %v536 = vpop.f32.mrf.mxu0
        %v537 = vadd.f32 %v393, %v536
        %538 = vmatprep.mubr.bf16.mxu0 0
        %539 = vmatmul.mubr.bf16.gmra.mxu0 %v363
        %v540 = vpop.f32.mrf.mxu0
        %v541 = vadd.f32 %v389, %v540
        %v542 = vpop.f32.mrf.mxu0
        %v543 = vadd.f32 %v393, %v542
        %v544 = vpop.f32.mrf.mxu0
        %v545 = vadd.f32 %v389, %v544
        %v546 = vpop.f32.mrf.mxu0
        %v547 = vadd.f32 %v393, %v546
        %548 = vmatprep.mubr.bf16.mxu0 0
        %549 = vmatmul.mubr.bf16.gmra.mxu0 %v364
        %v550 = vpop.f32.mrf.mxu0
        %v551 = vadd.f32 %v389, %v550
        %v552 = vpop.f32.mrf.mxu0
        %v553 = vadd.f32 %v393, %v552
        %v554 = vpop.f32.mrf.mxu0
        %v555 = vadd.f32 %v389, %v554
        %v556 = vpop.f32.mrf.mxu0
        %v557 = vadd.f32 %v393, %v556
        %558 = vmatprep.mubr.bf16.mxu0 0
        %559 = vmatmul.mubr.bf16.gmra.mxu0 %v365
        %v560 = vpop.f32.mrf.mxu0
        %v561 = vadd.f32 %v389, %v560
        %v562 = vpop.f32.mrf.mxu0
        %v563 = vadd.f32 %v393, %v562
        %v564 = vpop.f32.mrf.mxu0
        %v565 = vadd.f32 %v389, %v564
        %v566 = vpop.f32.mrf.mxu0
        %v567 = vadd.f32 %v393, %v566
        %568 = vmatprep.mubr.bf16.mxu0 0
        %569 = vmatmul.mubr.bf16.gmra.mxu0 %v366
        %v570 = vpop.f32.mrf.mxu0
        %v571 = vadd.f32 %v389, %v570
        %v572 = vpop.f32.mrf.mxu0
        %v573 = vadd.f32 %v393, %v572
        %v574 = vpop.f32.mrf.mxu0
        %v575 = vadd.f32 %v389, %v574
        %v576 = vpop.f32.mrf.mxu0
        %v577 = vadd.f32 %v393, %v576
        %578 = vmatprep.mubr.bf16.mxu0 0
        %579 = vmatmul.mubr.bf16.gmra.mxu0 %v367
        %v580 = vpop.f32.mrf.mxu0
        %v581 = vadd.f32 %v389, %v580
        %v582 = vpop.f32.mrf.mxu0
        %v583 = vadd.f32 %v393, %v582
        %v584 = vpop.f32.mrf.mxu0
        %v585 = vadd.f32 %v389, %v584
        %v586 = vpop.f32.mrf.mxu0
        %v587 = vadd.f32 %v393, %v586
        %588 = vdwg.mxu0
        %v589 = vmax.f32 %v511, 0.0
        %v590 = vmax.f32 %v513, 0.0
        %v591 = vmax.f32 %v515, 0.0
        %v592 = vmax.f32 %v517, 0.0
        %v593 = vmax.f32 %v521, 0.0
        %v594 = vmax.f32 %v523, 0.0
        %v595 = vmax.f32 %v525, 0.0
        %v596 = vmax.f32 %v527, 0.0
        %v597 = vmax.f32 %v531, 0.0
        %v598 = vmax.f32 %v533, 0.0
        %v599 = vmax.f32 %v535, 0.0
        %v600 = vmax.f32 %v537, 0.0
        %v601 = vmax.f32 %v541, 0.0
        %v602 = vmax.f32 %v543, 0.0
        %v603 = vmax.f32 %v545, 0.0
        %v604 = vmax.f32 %v547, 0.0
        %v605 = vmax.f32 %v551, 0.0
        %v606 = vmax.f32 %v553, 0.0
        %v607 = vmax.f32 %v555, 0.0
        %v608 = vmax.f32 %v557, 0.0
        %v609 = vmax.f32 %v561, 0.0
        %v610 = vmax.f32 %v563, 0.0
        %v611 = vmax.f32 %v565, 0.0
        %v612 = vmax.f32 %v567, 0.0
        %v613 = vmax.f32 %v571, 0.0
        %v614 = vmax.f32 %v573, 0.0
        %v615 = vmax.f32 %v575, 0.0
        %v616 = vmax.f32 %v577, 0.0
        %v617 = vmax.f32 %v581, 0.0
        %v618 = vmax.f32 %v583, 0.0
        %v619 = vmax.f32 %v585, 0.0
        %v620 = vmax.f32 %v587, 0.0
        %v621 = vpack.c.bf16 %v591, %v589
        %v622 = vpack.c.bf16 %v592, %v590
        %v623 = vpack.c.bf16 %v595, %v593
        %v624 = vpack.c.bf16 %v596, %v594
        %v625 = vpack.c.bf16 %v599, %v597
        %v626 = vpack.c.bf16 %v600, %v598
        %v627 = vpack.c.bf16 %v603, %v601
        %v628 = vpack.c.bf16 %v604, %v602
        %v629 = vpack.c.bf16 %v607, %v605
        %v630 = vpack.c.bf16 %v608, %v606
        %v631 = vpack.c.bf16 %v611, %v609
        %v632 = vpack.c.bf16 %v612, %v610
        %v633 = vpack.c.bf16 %v615, %v613
        %v634 = vpack.c.bf16 %v616, %v614
        %v635 = vpack.c.bf16 %v619, %v617
        %v636 = vpack.c.bf16 %v620, %v618
        %v637 = vld [vmem:[#allocation2] sm:$0xff]
        %v638 = vld [vmem:[#allocation2 + $0x8] sm:$0xff]
        %v639 = vld [vmem:[#allocation2 + $0x10] sm:$0xff]
        %v640 = vld [vmem:[#allocation2 + $0x18] sm:$0xff]
        %v641 = vld [vmem:[#allocation2 + $0x20] sm:$0xff]
        %v642 = vld [vmem:[#allocation2 + $0x28] sm:$0xff]
        %v643 = vld [vmem:[#allocation2 + $0x30] sm:$0xff]
        %v644 = vld [vmem:[#allocation2 + $0x38] sm:$0xff]
        %v645 = vld [vmem:[#allocation2 + $0x40] sm:$0xff]
        %v646 = vld [vmem:[#allocation2 + $0x48] sm:$0xff]
        %v647 = vld [vmem:[#allocation2 + $0x50] sm:$0xff]
        %v648 = vld [vmem:[#allocation2 + $0x58] sm:$0xff]
        %v649 = vld [vmem:[#allocation2 + $0x60] sm:$0xff]
        %v650 = vld [vmem:[#allocation2 + $0x68] sm:$0xff]
        %v651 = vld [vmem:[#allocation2 + $0x70] sm:$0xff]
        %v652 = vld [vmem:[#allocation2 + $0x78] sm:$0xff]
        %v653 = vld [vmem:[#allocation8] sm:$0xf]
        %v654 = vld [vmem:[#allocation8 + $0x4] sm:$0xf]
        %v655 = vld [vmem:[#allocation8 + $0x8] sm:$0xf]
        %v656 = vld [vmem:[#allocation8 + $0xc] sm:$0xf]
        %v657 = vld [vmem:[#allocation8 + $0x10] sm:$0xf]
        %v658 = vld [vmem:[#allocation8 + $0x14] sm:$0xf]
        %v659 = vld [vmem:[#allocation8 + $0x18] sm:$0xf]
        %v660 = vld [vmem:[#allocation8 + $0x1c] sm:$0xf]
        %v661 = vld [vmem:[#allocation8 + $0x20] sm:$0xf]
        %v662 = vld [vmem:[#allocation8 + $0x24] sm:$0xf]
        %v663 = vld [vmem:[#allocation8 + $0x28] sm:$0xf]
        %v664 = vld [vmem:[#allocation8 + $0x2c] sm:$0xf]
        %v665 = vld [vmem:[#allocation8 + $0x30] sm:$0xf]
        %v666 = vld [vmem:[#allocation8 + $0x34] sm:$0xf]
        %v667 = vld [vmem:[#allocation8 + $0x38] sm:$0xf]
        %v668 = vld [vmem:[#allocation8 + $0x3c] sm:$0xf]
        %v669 = vld [vmem:[#allocation8 + $0x40] sm:$0xf]
        %v670 = vld [vmem:[#allocation8 + $0x44] sm:$0xf]
        %v671 = vld [vmem:[#allocation8 + $0x48] sm:$0xf]
        %v672 = vld [vmem:[#allocation8 + $0x4c] sm:$0xf]
        %v673 = vld [vmem:[#allocation8 + $0x50] sm:$0xf]
        %v674 = vld [vmem:[#allocation8 + $0x54] sm:$0xf]
        %v675 = vld [vmem:[#allocation8 + $0x58] sm:$0xf]
        %v676 = vld [vmem:[#allocation8 + $0x5c] sm:$0xf]
        %v677 = vld [vmem:[#allocation8 + $0x60] sm:$0xf]
        %v678 = vld [vmem:[#allocation8 + $0x64] sm:$0xf]
        %v679 = vld [vmem:[#allocation8 + $0x68] sm:$0xf]
        %v680 = vld [vmem:[#allocation8 + $0x6c] sm:$0xf]
        %v681 = vld [vmem:[#allocation8 + $0x70] sm:$0xf]
        %v682 = vld [vmem:[#allocation8 + $0x74] sm:$0xf]
        %v683 = vld [vmem:[#allocation8 + $0x78] sm:$0xf]
        %v684 = vld [vmem:[#allocation8 + $0x7c] sm:$0xf]
        %v717 = vunpack.c.l.b16 %v653
        %v718 = vunpack.c.l.b16 %v654
        %v719 = vunpack.c.l.b16 %v655
        %v720 = vunpack.c.l.b16 %v656
        %v721 = vunpack.c.l.b16 %v657
        %v722 = vunpack.c.l.b16 %v658
        %v723 = vunpack.c.l.b16 %v659
        %v724 = vunpack.c.l.b16 %v660
        %v725 = vunpack.c.l.b16 %v661
        %v726 = vunpack.c.l.b16 %v662
        %v727 = vunpack.c.l.b16 %v663
        %v728 = vunpack.c.l.b16 %v664
        %v729 = vunpack.c.l.b16 %v665
        %v730 = vunpack.c.l.b16 %v666
        %v731 = vunpack.c.l.b16 %v667
        %v732 = vunpack.c.l.b16 %v668
        %v733 = vunpack.c.l.b16 %v669
        %v734 = vunpack.c.l.b16 %v670
        %v735 = vunpack.c.l.b16 %v671
        %v736 = vunpack.c.l.b16 %v672
        %v737 = vunpack.c.l.b16 %v673
        %v738 = vunpack.c.l.b16 %v674
        %v739 = vunpack.c.l.b16 %v675
        %v740 = vunpack.c.l.b16 %v676
        %v741 = vunpack.c.l.b16 %v677
        %v742 = vunpack.c.l.b16 %v678
        %v743 = vunpack.c.l.b16 %v679
        %v744 = vunpack.c.l.b16 %v680
        %v745 = vunpack.c.l.b16 %v681
        %v746 = vunpack.c.l.b16 %v682
        %v747 = vunpack.c.l.b16 %v683
        %v748 = vunpack.c.l.b16 %v684
        %v749 = vpack.c.b16 %v718, %v717
        %v750 = vpack.c.b16 %v720, %v719
        %v751 = vpack.c.b16 %v722, %v721
        %v752 = vpack.c.b16 %v724, %v723
        %v753 = vpack.c.b16 %v726, %v725
        %v754 = vpack.c.b16 %v728, %v727
        %v755 = vpack.c.b16 %v730, %v729
        %v756 = vpack.c.b16 %v732, %v731
        %v757 = vpack.c.b16 %v734, %v733
        %v758 = vpack.c.b16 %v736, %v735
        %v759 = vpack.c.b16 %v738, %v737
        %v760 = vpack.c.b16 %v740, %v739
        %v761 = vpack.c.b16 %v742, %v741
        %v762 = vpack.c.b16 %v744, %v743
        %v763 = vpack.c.b16 %v746, %v745
        %v764 = vpack.c.b16 %v748, %v747
        %781 = vmatprep.subr.bf16.mxu0 0
        %782 = vmatpush1.bf16.msra.mxu0 %v756
        %783 = vmatprep.subr.bf16.mxu0 0
        %784 = vmatpush1.bf16.msra.mxu0 %v755
        %785 = vmatprep.subr.bf16.mxu0 0
        %786 = vmatpush1.bf16.msra.mxu0 %v754
        %787 = vmatprep.subr.bf16.mxu0 0
        %788 = vmatpush1.bf16.msra.mxu0 %v753
        %789 = vmatprep.subr.bf16.mxu0 0
        %790 = vmatpush1.bf16.msra.mxu0 %v752
        %791 = vmatprep.subr.bf16.mxu0 0
        %792 = vmatpush1.bf16.msra.mxu0 %v751
        %793 = vmatprep.subr.bf16.mxu0 0
        %794 = vmatpush1.bf16.msra.mxu0 %v750
        %795 = vmatprep.subr.bf16.mxu0 0
        %796 = vmatpush1.bf16.msra.mxu0 %v749
        %797 = vmatprep.subr.bf16.mxu0 0
        %798 = vmatpush2.bf16.msra.mxu0 %v764
        %799 = vmatprep.subr.bf16.mxu0 0
        %800 = vmatpush2.bf16.msra.mxu0 %v763
        %801 = vmatprep.subr.bf16.mxu0 0
        %802 = vmatpush2.bf16.msra.mxu0 %v762
        %803 = vmatprep.subr.bf16.mxu0 0
        %804 = vmatpush2.bf16.msra.mxu0 %v761
        %805 = vmatprep.subr.bf16.mxu0 0
        %806 = vmatpush2.bf16.msra.mxu0 %v760
        %807 = vmatprep.subr.bf16.mxu0 0
        %808 = vmatpush2.bf16.msra.mxu0 %v759
        %809 = vmatprep.subr.bf16.mxu0 0
        %810 = vmatpush2.bf16.msra.mxu0 %v758
        %811 = vmatprep.subr.bf16.mxu0 0
        %812 = vmatpush2.bf16.msra.mxu0 %v757
        %813 = vmatprep.mubr.bf16.mxu0 %v622
        %814 = vmatmul.mubr.bf16.gmra.mxu0 %v621
        %v815 = vpop.f32.mrf.mxu0
        %v816 = vadd.f32 0.0, %v815
        %v817 = vpop.f32.mrf.mxu0
        %v818 = vpop.f32.mrf.mxu0
        %v819 = vadd.f32 0.0, %v818
        %v820 = vpop.f32.mrf.mxu0
        %821 = vmatprep.mubr.bf16.mxu0 %v624
        %822 = vmatmul.mubr.bf16.gmra.mxu0 %v623
        %v823 = vpop.f32.mrf.mxu0
        %v824 = vadd.f32 0.0, %v823
        %v825 = vpop.f32.mrf.mxu0
        %v826 = vpop.f32.mrf.mxu0
        %v827 = vadd.f32 0.0, %v826
        %v828 = vpop.f32.mrf.mxu0
        %829 = vmatprep.mubr.bf16.mxu0 %v626
        %830 = vmatmul.mubr.bf16.gmra.mxu0 %v625
        %v831 = vpop.f32.mrf.mxu0
        %v832 = vadd.f32 0.0, %v831
        %v833 = vpop.f32.mrf.mxu0
        %v834 = vpop.f32.mrf.mxu0
        %v835 = vadd.f32 0.0, %v834
        %v836 = vpop.f32.mrf.mxu0
        %837 = vmatprep.mubr.bf16.mxu0 %v628
        %838 = vmatmul.mubr.bf16.gmra.mxu0 %v627
        %v839 = vpop.f32.mrf.mxu0
        %v840 = vadd.f32 0.0, %v839
        %v841 = vpop.f32.mrf.mxu0
        %v842 = vpop.f32.mrf.mxu0
        %v843 = vadd.f32 0.0, %v842
        %v844 = vpop.f32.mrf.mxu0
        %845 = vmatprep.mubr.bf16.mxu0 %v630
        %846 = vmatmul.mubr.bf16.gmra.mxu0 %v629
        %v847 = vpop.f32.mrf.mxu0
        %v848 = vadd.f32 0.0, %v847
        %v849 = vpop.f32.mrf.mxu0
        %v850 = vpop.f32.mrf.mxu0
        %v851 = vadd.f32 0.0, %v850
        %v852 = vpop.f32.mrf.mxu0
        %853 = vmatprep.mubr.bf16.mxu0 %v632
        %854 = vmatmul.mubr.bf16.gmra.mxu0 %v631
        %v855 = vpop.f32.mrf.mxu0
        %v856 = vadd.f32 0.0, %v855
        %v857 = vpop.f32.mrf.mxu0
        %v858 = vpop.f32.mrf.mxu0
        %v859 = vadd.f32 0.0, %v858
        %v860 = vpop.f32.mrf.mxu0
        %861 = vmatprep.mubr.bf16.mxu0 %v634
        %862 = vmatmul.mubr.bf16.gmra.mxu0 %v633
        %v863 = vpop.f32.mrf.mxu0
        %v864 = vadd.f32 0.0, %v863
        %v865 = vpop.f32.mrf.mxu0
        %v866 = vpop.f32.mrf.mxu0
        %v867 = vadd.f32 0.0, %v866
        %v868 = vpop.f32.mrf.mxu0
        %869 = vmatprep.mubr.bf16.mxu0 %v636
        %870 = vmatmul.mubr.bf16.gmra.mxu0 %v635
        %v871 = vpop.f32.mrf.mxu0
        %v872 = vadd.f32 0.0, %v871
        %v873 = vpop.f32.mrf.mxu0
        %v874 = vpop.f32.mrf.mxu0
        %v875 = vadd.f32 0.0, %v874
        %v876 = vpop.f32.mrf.mxu0
        %877 = vdwg.mxu0
        %v878 = vadd.f32 %v637, %v816
        %v879 = vadd.f32 %v638, %v819
        %v880 = vadd.f32 %v639, %v824
        %v881 = vadd.f32 %v640, %v827
        %v882 = vadd.f32 %v641, %v832
        %v883 = vadd.f32 %v642, %v835
        %v884 = vadd.f32 %v643, %v840
        %v885 = vadd.f32 %v644, %v843
        %v886 = vadd.f32 %v645, %v848
        %v887 = vadd.f32 %v646, %v851
        %v888 = vadd.f32 %v647, %v856
        %v889 = vadd.f32 %v648, %v859
        %v890 = vadd.f32 %v649, %v864
        %v891 = vadd.f32 %v650, %v867
        %v892 = vadd.f32 %v651, %v872
        %v893 = vadd.f32 %v652, %v875
        %894 = vst [vmem:[#allocation2] sm:$0xff] %v878
        %895 = vst [vmem:[#allocation2 + $0x8] sm:$0xff] %v879
        %896 = vst [vmem:[#allocation2 + $0x10] sm:$0xff] %v880
        %897 = vst [vmem:[#allocation2 + $0x18] sm:$0xff] %v881
        %898 = vst [vmem:[#allocation2 + $0x20] sm:$0xff] %v882
        %899 = vst [vmem:[#allocation2 + $0x28] sm:$0xff] %v883
        %900 = vst [vmem:[#allocation2 + $0x30] sm:$0xff] %v884
        %901 = vst [vmem:[#allocation2 + $0x38] sm:$0xff] %v885
        %902 = vst [vmem:[#allocation2 + $0x40] sm:$0xff] %v886
        %903 = vst [vmem:[#allocation2 + $0x48] sm:$0xff] %v887
        %904 = vst [vmem:[#allocation2 + $0x50] sm:$0xff] %v888
        %905 = vst [vmem:[#allocation2 + $0x58] sm:$0xff] %v889
        %906 = vst [vmem:[#allocation2 + $0x60] sm:$0xff] %v890
        %907 = vst [vmem:[#allocation2 + $0x68] sm:$0xff] %v891
        %908 = vst [vmem:[#allocation2 + $0x70] sm:$0xff] %v892
        %909 = vst [vmem:[#allocation2 + $0x78] sm:$0xff] %v893
        // Predicated region
        $region57: #{tpu_custom_call.1} parent=39 // pred_check
          %p910 = pneg %p324
        $region58: #{tpu_custom_call.1} parent=39 // pred_check_branch
          %912 = sbr.rel (%p910) target = $region60
        $region59: #{tpu_custom_call.1} parent=39 // pred_region
          %v913 = vld [vmem:[#allocation2] sm:$0xff]
          %v914 = vld [vmem:[#allocation2 + $0x8] sm:$0xff]
          %v915 = vld [vmem:[#allocation2 + $0x10] sm:$0xff]
          %v916 = vld [vmem:[#allocation2 + $0x18] sm:$0xff]
          %v917 = vld [vmem:[#allocation2 + $0x20] sm:$0xff]
          %v918 = vld [vmem:[#allocation2 + $0x28] sm:$0xff]
          %v919 = vld [vmem:[#allocation2 + $0x30] sm:$0xff]
          %v920 = vld [vmem:[#allocation2 + $0x38] sm:$0xff]
          %v921 = vld [vmem:[#allocation2 + $0x40] sm:$0xff]
          %v922 = vld [vmem:[#allocation2 + $0x48] sm:$0xff]
          %v923 = vld [vmem:[#allocation2 + $0x50] sm:$0xff]
          %v924 = vld [vmem:[#allocation2 + $0x58] sm:$0xff]
          %v925 = vld [vmem:[#allocation2 + $0x60] sm:$0xff]
          %v926 = vld [vmem:[#allocation2 + $0x68] sm:$0xff]
          %v927 = vld [vmem:[#allocation2 + $0x70] sm:$0xff]
          %v928 = vld [vmem:[#allocation2 + $0x78] sm:$0xff]
          %v929 = vld [vmem:[%s4] sm:$0x1]
          %v931 = vlaneseq
          %v932 = vshrl.u32 %v931, 7
          %v933 = vsub.s32 0, %v932
          %v934 = vrot.slane %v929, %v933
          %v936 = vadd.f32 %v913, %v934
          %v937 = vadd.f32 %v914, %v934
          %v938 = vadd.f32 %v915, %v934
          %v939 = vadd.f32 %v916, %v934
          %v940 = vadd.f32 %v917, %v934
          %v941 = vadd.f32 %v918, %v934
          %v942 = vadd.f32 %v919, %v934
          %v943 = vadd.f32 %v920, %v934
          %v944 = vadd.f32 %v921, %v934
          %v945 = vadd.f32 %v922, %v934
          %v946 = vadd.f32 %v923, %v934
          %v947 = vadd.f32 %v924, %v934
          %v948 = vadd.f32 %v925, %v934
          %v949 = vadd.f32 %v926, %v934
          %v950 = vadd.f32 %v927, %v934
          %v951 = vadd.f32 %v928, %v934
          %952 = vst [vmem:[%s313] sm:$0xff] %v936
          %953 = vst [vmem:[%s313 + $0x8] sm:$0xff] %v937
          %954 = vst [vmem:[%s313 + $0x10] sm:$0xff] %v938
          %955 = vst [vmem:[%s313 + $0x18] sm:$0xff] %v939
          %956 = vst [vmem:[%s313 + $0x20] sm:$0xff] %v940
          %957 = vst [vmem:[%s313 + $0x28] sm:$0xff] %v941
          %958 = vst [vmem:[%s313 + $0x30] sm:$0xff] %v942
          %959 = vst [vmem:[%s313 + $0x38] sm:$0xff] %v943
          %960 = vst [vmem:[%s313 + $0x40] sm:$0xff] %v944
          %961 = vst [vmem:[%s313 + $0x48] sm:$0xff] %v945
          %962 = vst [vmem:[%s313 + $0x50] sm:$0xff] %v946
          %963 = vst [vmem:[%s313 + $0x58] sm:$0xff] %v947
          %964 = vst [vmem:[%s313 + $0x60] sm:$0xff] %v948
          %965 = vst [vmem:[%s313 + $0x68] sm:$0xff] %v949
          %966 = vst [vmem:[%s313 + $0x70] sm:$0xff] %v950
          %967 = vst [vmem:[%s313 + $0x78] sm:$0xff] %v951
        $region60: #{tpu_custom_call.1} parent=39 // pred_fallthru
          _
        %s968 = sand.u32 %s168, 1
        %s969 = scalar_lea.sflag [#allocation5], %s968
        %s970 = sand.u32 %s168, 1
        %s971 = smul.addr %s970, 128
        %s972 = scalar_lea.vmem [#allocation9], %s971
        // Predicated region
        $region61: #{tpu_custom_call.1} parent=39 // pred_check
          %p973 = pneg %p178
        $region62: #{tpu_custom_call.1} parent=39 // pred_check_branch
          %975 = sbr.rel (%p973) target = $region64
        $region63: #{tpu_custom_call.1} parent=39 // pred_region
          %s976 = smul.u32 16, %s27
          %s978 = ssub.s32 2048, 2048
          %979 = vsyncadd %s969, %s978
          %s980 = smul.addr %s976, 128
          %s981 = scalar_lea.hbm %s5, %s980
          %s982 = sshll.u32 %s972, 4
          %s983 = int_to_ptr.vmem [resolvable:$true] %s982
          %988 = dma.vmem_to_hbm [thread:$0]  %s983, 2048, %s981, %s969, 128, 128, 8
        $region64: #{tpu_custom_call.1} parent=39 // pred_fallthru
          _
      $region40: #{tpu_custom_call.1} parent=5 // pred_fallthru
        _
      %p989 = scmp.le.s32.totalorder 2, %s18
      // Predicated region
      $region65: #{tpu_custom_call.1} parent=5 // pred_check
        %p990 = pneg %p989
      $region66: #{tpu_custom_call.1} parent=5 // pred_check_branch
        %992 = sbr.rel (%p990) target = $region68
      $region67: #{tpu_custom_call.1} parent=5 // pred_region
        %s993 = ssub.s32 %s18, 2
        // Predicated region
        $region69: #{tpu_custom_call.1} parent=67 // pred_check
          %p994 = pneg %p184
        $region70: #{tpu_custom_call.1} parent=67 // pred_check_branch
          %996 = sbr.rel (%p994) target = $region72
        $region71: #{tpu_custom_call.1} parent=67 // pred_region
          %s997 = sand.u32 %s169, 1
          %s998 = scalar_lea.sflag [#allocation5], %s997
          %s999 = sand.u32 %s169, 1
          %s1000 = smul.addr %s999, 128
          %s1001 = scalar_lea.vmem [#allocation9], %s1000
          %1002 = dma.done %s998, 2048
        $region72: #{tpu_custom_call.1} parent=67 // pred_fallthru
          _
      $region68: #{tpu_custom_call.1} parent=5 // pred_fallthru
        _
    $region6: #{tpu_custom_call.1} parent=1 // loop_footer
      %s22 = sadd.s32 1, %s18
    $region7: #{tpu_custom_call.1} parent=1 // loop_footer_branch
      %17 = sbr.rel target = $region3
    $region8: #{tpu_custom_call.1} parent=1 // loop_exit
      _
    %1003 = vsyncpa [#allocation4], 1
    %s1004 = scalar_lea.sflag [#allocation4], 1
    %1005 = vsyncpa %s1004, 1
    %1006 = vsyncpa [#allocation7], 1
    %1007 = vsyncpa [#allocation5], 1
    %s1008 = scalar_lea.sflag [#allocation5], 1
    %1009 = vsyncpa %s1008, 1

</llo_original>
